<compile_context>
chip_gen: v5e
topology: v5e:2x2
jax: 0.10.0
libtpu: 0.0.40
codegen_flags: <defaults>
</compile_context>

<pallas_src>
import functools
import math

import jax
import jax.numpy as jnp
from jax import lax
from jax.experimental import pallas as pl
from jax.experimental.pallas import tpu as pltpu


def _scan_max(y, idx, n, stride, reverse):
    """Hillis-Steele prefix (suffix if reverse) max along a logical axis of
    length `n` whose consecutive elements are `stride` apart in the flattened
    lane dimension of `y`.

    y:   (R, HW) float32 -- R independent packed (H*W) planes
    idx: (1, HW) int32   -- logical coordinate along the scanned axis
                            (row index p // W for the H scan, column p % W for W)
    """
    hw = y.shape[-1]
    s = 1
    while s < n:                                      # max shift = (n/2)*stride < hw
        shift = s * stride
        if not reverse:
            rolled = pltpu.roll(y, shift, axis=1)       # rolled[p] = y[p - shift]
            valid = idx >= s
        else:
            rolled = pltpu.roll(y, hw - shift, axis=1)  # rolled[p] = y[p + shift]
            valid = idx < (n - s)
        # keep y where invalid (identity for max); (1,HW) mask broadcasts in where
        y = jnp.where(valid, jnp.maximum(y, rolled), y)
        s *= 2
    return y


def _boundary_agg_kernel(x_ref, w_ref, b_ref, row_ref, col_ref, o_ref, *, H, W):
    # x_ref  : (TB*C, HW)          TB packed batch elements, channels-first, spatial flat
    # w_ref  : (TB*Cout, 5*TB*C)   block-diagonal (over the batch tile) 1x1-conv weight
    # b_ref  : (TB*Cout, 1)        bias, added once at the output store
    # row_ref: (1, HW) int32       p // W
    # col_ref: (1, HW) int32       p % W
    # o_ref  : (TB*Cout, HW)
    x = x_ref[...]
    row = row_ref[...]
    col = col_ref[...]

    # four directional max scans on the whole packed block (full 8 sublanes)
    x1 = _scan_max(x, row, H, W, reverse=False)   # prefix max over H (top -> bottom)
    x2 = _scan_max(x, row, H, W, reverse=True)    # suffix max over H (bottom -> up)
    x3 = _scan_max(x, col, W, 1, reverse=False)   # prefix max over W (left -> right)
    x4 = _scan_max(x, col, W, 1, reverse=True)    # suffix max over W (right -> left)

    # ONE fused MXU matmul for the 1x1 conv of every packed batch element
    xc = jnp.concatenate([x, x1, x2, x3, x4], axis=0)          # (5*TB*C, HW)
    acc = jnp.dot(w_ref[...], xc.astype(w_ref.dtype),
                  preferred_element_type=jnp.float32)
    o_ref[...] = (acc + b_ref[...]).astype(o_ref.dtype)


def _derive_vmem_limit_bytes(TB, C, Cout, HW):
    """Review item 6: derive scoped-VMEM need from actual block bytes; only
    override the default when needed, capped at v7x's 64 MiB physical VMEM."""
    f32 = 4
    x_blk = TB * C * HW * f32
    out_blk = TB * Cout * HW * f32
    resident = (TB * Cout * 5 * TB * C + TB * Cout + 2 * HW) * f32
    # live in-kernel temporaries: x, x1..x4, the concatenated plane, the f32 acc
    temps = (10 * TB * C * HW + TB * Cout * HW) * f32
    need = 2 * (x_blk + out_blk) + 2 * resident + temps
    if need <= 16 * 1024 * 1024:   # smallest default scoped limit across v5e/v6e/v7x
        return None
    return min(int(need * 1.25), 64 * 1024 * 1024)


def boundary_aggregation(x_nchw, weight, bias, *, mxu_dtype=jnp.float32):
    """x_nchw: (B, C, H, W) f32; weight: (Cout, 5C) (= torch weight[:, :, 0, 0]);
    bias: (Cout,).  Set mxu_dtype=jnp.bfloat16 on v6e/v7x for bf16 MXU operands
    (f32 accumulation kept; scans stay f32)."""
    B, C, H, W = x_nchw.shape
    Cout = weight.shape[0]
    HW = H * W

    # --- batch-tile choice: fill all 8 vreg sublanes per block (item 1) ---
    tb0 = 8 // math.gcd(C, 8)          # smallest TB with TB*C % 8 == 0
    if B % tb0 == 0:
        TB = tb0
    else:
        TB = B                         # single block covering everything (block == full dim)
    n_blocks = B // TB

    x_packed = x_nchw.reshape(B * C, HW)                       # contiguous reshape, free

    # block-diagonal (over the batch tile) 1x1-conv weight: (TB*Cout, 5*TB*C)
    # columns ordered group-major then batch-tile then channel, matching the
    # in-kernel concatenate of the packed feature planes.
    w5 = weight.reshape(Cout, 5, C)                            # w5[o, g, c] = weight[o, g*C + c]
    w_bd = jnp.einsum("tu,ogc->toguc", jnp.eye(TB, dtype=weight.dtype), w5)
    w_bd = w_bd.reshape(TB * Cout, 5 * TB * C).astype(mxu_dtype)

    b_pack = jnp.tile(bias.astype(jnp.float32), TB).reshape(TB * Cout, 1)
    p = jnp.arange(HW, dtype=jnp.int32)
    row_tbl = (p // W).reshape(1, HW)
    col_tbl = (p % W).reshape(1, HW)

    kernel = functools.partial(_boundary_agg_kernel, H=H, W=W)

    cp_kwargs = dict(dimension_semantics=("parallel",))        # megacore-shard the grid
    vmem_limit = _derive_vmem_limit_bytes(TB, C, Cout, HW)
    if vmem_limit is not None:
        cp_kwargs["vmem_limit_bytes"] = vmem_limit

    out = pl.pallas_call(
        kernel,
        grid=(n_blocks,),
        in_specs=[
            pl.BlockSpec((TB * C, HW), lambda b: (b, 0)),             # x: TB batch elems / step
            pl.BlockSpec((TB * Cout, 5 * TB * C), lambda b: (0, 0)),  # weight: resident
            pl.BlockSpec((TB * Cout, 1), lambda b: (0, 0)),           # bias: resident
            pl.BlockSpec((1, HW), lambda b: (0, 0)),                  # row-index table: resident
            pl.BlockSpec((1, HW), lambda b: (0, 0)),                  # col-index table: resident
        ],
        out_specs=pl.BlockSpec((TB * Cout, HW), lambda b: (b, 0)),
        out_shape=jax.ShapeDtypeStruct((B * Cout, HW), x_nchw.dtype),
        compiler_params=pltpu.CompilerParams(**cp_kwargs),
    )(x_packed, w_bd, b_pack, row_tbl, col_tbl)

    return out.reshape(B, Cout, H, W)                 # contiguous reshape back to NCHW, free


def reference(x, weight, bias):
    """Pure-JAX reference of the PyTorch forward."""
    x1 = lax.cummax(x, axis=2)
    x2 = lax.cummax(x, axis=2, reverse=True)
    x3 = lax.cummax(x, axis=3)
    x4 = lax.cummax(x, axis=3, reverse=True)
    xc = jnp.concatenate([x, x1, x2, x3, x4], axis=1)
    y = jnp.einsum("bihw,oi->bohw", xc, weight,
                   precision=lax.Precision.HIGHEST) + bias[None, :, None, None]
    return y


if __name__ == "__main__":
    key = jax.random.PRNGKey(0)
    kx, kw, kb = jax.random.split(key, 3)

    B, C, H, W = 2, 4, 16, 16
    x = jax.random.normal(kx, (B, C, H, W), dtype=jnp.float32)

    # Deterministic synthetic parameters for Conv2d(in_channels*5, in_channels, 1):
    # torch weight shape (C, 5C, 1, 1) -> stored here as (C, 5C); bias shape (C,)
    weight = jax.random.normal(kw, (C, 5 * C), dtype=jnp.float32) * 0.1
    bias = jax.random.normal(kb, (C,), dtype=jnp.float32) * 0.1

    y = jax.jit(boundary_aggregation)(x, weight, bias)
    y = jax.block_until_ready(y)

    y_ref = reference(x, weight, bias)
    assert y.shape == (B, C, H, W) and y.dtype == jnp.float32
    err = float(jnp.max(jnp.abs(y - y_ref)))
    assert jnp.allclose(y, y_ref, atol=1e-4, rtol=1e-4), err

    print("KERNEL_OK")
</pallas_src>

<mosaic_0001>
module attributes {stable_mosaic.version = 11 : i64} {
  func.func @_boundary_agg_kernel(%arg0: i32, %arg1: memref<8x256xf32, #tpu.memory_space<vmem>>, %arg2: memref<8x40xf32, #tpu.memory_space<vmem>>, %arg3: memref<8x1xf32, #tpu.memory_space<vmem>>, %arg4: memref<1x256xi32, #tpu.memory_space<vmem>>, %arg5: memref<1x256xi32, #tpu.memory_space<vmem>>, %arg6: memref<8x256xf32, #tpu.memory_space<vmem>>) attributes {dimension_semantics = [#tpu.dimension_semantics<parallel>], iteration_bounds = array<i64: 1>, scalar_prefetch = 0 : i64, scratch_operands = 0 : i64, tpu.core_type = #tpu.core_type<tc>, window_params = [{transform_indices = @transform_0, window_bounds = array<i64: 8, 256>}, {pipeline_mode = #tpu.pipeline_mode<synchronous>, transform_indices = @transform_1, window_bounds = array<i64: 8, 40>}, {pipeline_mode = #tpu.pipeline_mode<synchronous>, transform_indices = @transform_2, window_bounds = array<i64: 8, 1>}, {pipeline_mode = #tpu.pipeline_mode<synchronous>, transform_indices = @transform_3, window_bounds = array<i64: 1, 256>}, {pipeline_mode = #tpu.pipeline_mode<synchronous>, transform_indices = @transform_4, window_bounds = array<i64: 1, 256>}, {transform_indices = @transform_5, window_bounds = array<i64: 8, 256>}]} {
    %c0 = arith.constant 0 : index
    %c0_0 = arith.constant 0 : index
    %0 = vector.load %arg1[%c0, %c0_0] : memref<8x256xf32, #tpu.memory_space<vmem>>, vector<8x256xf32>
    %c0_1 = arith.constant 0 : index
    %c0_2 = arith.constant 0 : index
    %1 = vector.load %arg4[%c0_1, %c0_2] : memref<1x256xi32, #tpu.memory_space<vmem>>, vector<1x256xi32>
    %c0_3 = arith.constant 0 : index
    %c0_4 = arith.constant 0 : index
    %2 = vector.load %arg5[%c0_3, %c0_4] : memref<1x256xi32, #tpu.memory_space<vmem>>, vector<1x256xi32>
    %c16_i32 = arith.constant 16 : i32
    %3 = tpu.dynamic_rotate %0 by %c16_i32 dim 1 : vector<8x256xf32>, i32 -> vector<8x256xf32>
    %c1_i32 = arith.constant 1 : i32
    %4 = vector.broadcast %c1_i32 : i32 to vector<1x256xi32>
    %5 = arith.cmpi sge, %1, %4 : vector<1x256xi32>
    %6 = arith.maximumf %0, %3 : vector<8x256xf32>
    %7 = vector.shape_cast %5 : vector<1x256xi1> to vector<1x256xi1>
    %8 = vector.broadcast %7 : vector<1x256xi1> to vector<8x256xi1>
    %9 = arith.select %8, %6, %0 : vector<8x256xi1>, vector<8x256xf32>
    %c32_i32 = arith.constant 32 : i32
    %10 = tpu.dynamic_rotate %9 by %c32_i32 dim 1 : vector<8x256xf32>, i32 -> vector<8x256xf32>
    %c2_i32 = arith.constant 2 : i32
    %11 = vector.broadcast %c2_i32 : i32 to vector<1x256xi32>
    %12 = arith.cmpi sge, %1, %11 : vector<1x256xi32>
    %13 = arith.maximumf %9, %10 : vector<8x256xf32>
    %14 = vector.shape_cast %12 : vector<1x256xi1> to vector<1x256xi1>
    %15 = vector.broadcast %14 : vector<1x256xi1> to vector<8x256xi1>
    %16 = arith.select %15, %13, %9 : vector<8x256xi1>, vector<8x256xf32>
    %c64_i32 = arith.constant 64 : i32
    %17 = tpu.dynamic_rotate %16 by %c64_i32 dim 1 : vector<8x256xf32>, i32 -> vector<8x256xf32>
    %c4_i32 = arith.constant 4 : i32
    %18 = vector.broadcast %c4_i32 : i32 to vector<1x256xi32>
    %19 = arith.cmpi sge, %1, %18 : vector<1x256xi32>
    %20 = arith.maximumf %16, %17 : vector<8x256xf32>
    %21 = vector.shape_cast %19 : vector<1x256xi1> to vector<1x256xi1>
    %22 = vector.broadcast %21 : vector<1x256xi1> to vector<8x256xi1>
    %23 = arith.select %22, %20, %16 : vector<8x256xi1>, vector<8x256xf32>
    %c128_i32 = arith.constant 128 : i32
    %24 = tpu.dynamic_rotate %23 by %c128_i32 dim 1 : vector<8x256xf32>, i32 -> vector<8x256xf32>
    %c8_i32 = arith.constant 8 : i32
    %25 = vector.broadcast %c8_i32 : i32 to vector<1x256xi32>
    %26 = arith.cmpi sge, %1, %25 : vector<1x256xi32>
    %27 = arith.maximumf %23, %24 : vector<8x256xf32>
    %28 = vector.shape_cast %26 : vector<1x256xi1> to vector<1x256xi1>
    %29 = vector.broadcast %28 : vector<1x256xi1> to vector<8x256xi1>
    %30 = arith.select %29, %27, %23 : vector<8x256xi1>, vector<8x256xf32>
    %c240_i32 = arith.constant 240 : i32
    %31 = tpu.dynamic_rotate %0 by %c240_i32 dim 1 : vector<8x256xf32>, i32 -> vector<8x256xf32>
    %c15_i32 = arith.constant 15 : i32
    %32 = vector.broadcast %c15_i32 : i32 to vector<1x256xi32>
    %33 = arith.cmpi slt, %1, %32 : vector<1x256xi32>
    %34 = arith.maximumf %0, %31 : vector<8x256xf32>
    %35 = vector.shape_cast %33 : vector<1x256xi1> to vector<1x256xi1>
    %36 = vector.broadcast %35 : vector<1x256xi1> to vector<8x256xi1>
    %37 = arith.select %36, %34, %0 : vector<8x256xi1>, vector<8x256xf32>
    %c224_i32 = arith.constant 224 : i32
    %38 = tpu.dynamic_rotate %37 by %c224_i32 dim 1 : vector<8x256xf32>, i32 -> vector<8x256xf32>
    %c14_i32 = arith.constant 14 : i32
    %39 = vector.broadcast %c14_i32 : i32 to vector<1x256xi32>
    %40 = arith.cmpi slt, %1, %39 : vector<1x256xi32>
    %41 = arith.maximumf %37, %38 : vector<8x256xf32>
    %42 = vector.shape_cast %40 : vector<1x256xi1> to vector<1x256xi1>
    %43 = vector.broadcast %42 : vector<1x256xi1> to vector<8x256xi1>
    %44 = arith.select %43, %41, %37 : vector<8x256xi1>, vector<8x256xf32>
    %c192_i32 = arith.constant 192 : i32
    %45 = tpu.dynamic_rotate %44 by %c192_i32 dim 1 : vector<8x256xf32>, i32 -> vector<8x256xf32>
    %c12_i32 = arith.constant 12 : i32
    %46 = vector.broadcast %c12_i32 : i32 to vector<1x256xi32>
    %47 = arith.cmpi slt, %1, %46 : vector<1x256xi32>
    %48 = arith.maximumf %44, %45 : vector<8x256xf32>
    %49 = vector.shape_cast %47 : vector<1x256xi1> to vector<1x256xi1>
    %50 = vector.broadcast %49 : vector<1x256xi1> to vector<8x256xi1>
    %51 = arith.select %50, %48, %44 : vector<8x256xi1>, vector<8x256xf32>
    %c128_i32_5 = arith.constant 128 : i32
    %52 = tpu.dynamic_rotate %51 by %c128_i32_5 dim 1 : vector<8x256xf32>, i32 -> vector<8x256xf32>
    %c8_i32_6 = arith.constant 8 : i32
    %53 = vector.broadcast %c8_i32_6 : i32 to vector<1x256xi32>
    %54 = arith.cmpi slt, %1, %53 : vector<1x256xi32>
    %55 = arith.maximumf %51, %52 : vector<8x256xf32>
    %56 = vector.shape_cast %54 : vector<1x256xi1> to vector<1x256xi1>
    %57 = vector.broadcast %56 : vector<1x256xi1> to vector<8x256xi1>
    %58 = arith.select %57, %55, %51 : vector<8x256xi1>, vector<8x256xf32>
    %c1_i32_7 = arith.constant 1 : i32
    %59 = tpu.dynamic_rotate %0 by %c1_i32_7 dim 1 : vector<8x256xf32>, i32 -> vector<8x256xf32>
    %c1_i32_8 = arith.constant 1 : i32
    %60 = vector.broadcast %c1_i32_8 : i32 to vector<1x256xi32>
    %61 = arith.cmpi sge, %2, %60 : vector<1x256xi32>
    %62 = arith.maximumf %0, %59 : vector<8x256xf32>
    %63 = vector.shape_cast %61 : vector<1x256xi1> to vector<1x256xi1>
    %64 = vector.broadcast %63 : vector<1x256xi1> to vector<8x256xi1>
    %65 = arith.select %64, %62, %0 : vector<8x256xi1>, vector<8x256xf32>
    %c2_i32_9 = arith.constant 2 : i32
    %66 = tpu.dynamic_rotate %65 by %c2_i32_9 dim 1 : vector<8x256xf32>, i32 -> vector<8x256xf32>
    %c2_i32_10 = arith.constant 2 : i32
    %67 = vector.broadcast %c2_i32_10 : i32 to vector<1x256xi32>
    %68 = arith.cmpi sge, %2, %67 : vector<1x256xi32>
    %69 = arith.maximumf %65, %66 : vector<8x256xf32>
    %70 = vector.shape_cast %68 : vector<1x256xi1> to vector<1x256xi1>
    %71 = vector.broadcast %70 : vector<1x256xi1> to vector<8x256xi1>
    %72 = arith.select %71, %69, %65 : vector<8x256xi1>, vector<8x256xf32>
    %c4_i32_11 = arith.constant 4 : i32
    %73 = tpu.dynamic_rotate %72 by %c4_i32_11 dim 1 : vector<8x256xf32>, i32 -> vector<8x256xf32>
    %c4_i32_12 = arith.constant 4 : i32
    %74 = vector.broadcast %c4_i32_12 : i32 to vector<1x256xi32>
    %75 = arith.cmpi sge, %2, %74 : vector<1x256xi32>
    %76 = arith.maximumf %72, %73 : vector<8x256xf32>
    %77 = vector.shape_cast %75 : vector<1x256xi1> to vector<1x256xi1>
    %78 = vector.broadcast %77 : vector<1x256xi1> to vector<8x256xi1>
    %79 = arith.select %78, %76, %72 : vector<8x256xi1>, vector<8x256xf32>
    %c8_i32_13 = arith.constant 8 : i32
    %80 = tpu.dynamic_rotate %79 by %c8_i32_13 dim 1 : vector<8x256xf32>, i32 -> vector<8x256xf32>
    %c8_i32_14 = arith.constant 8 : i32
    %81 = vector.broadcast %c8_i32_14 : i32 to vector<1x256xi32>
    %82 = arith.cmpi sge, %2, %81 : vector<1x256xi32>
    %83 = arith.maximumf %79, %80 : vector<8x256xf32>
    %84 = vector.shape_cast %82 : vector<1x256xi1> to vector<1x256xi1>
    %85 = vector.broadcast %84 : vector<1x256xi1> to vector<8x256xi1>
    %86 = arith.select %85, %83, %79 : vector<8x256xi1>, vector<8x256xf32>
    %c255_i32 = arith.constant 255 : i32
    %87 = tpu.dynamic_rotate %0 by %c255_i32 dim 1 : vector<8x256xf32>, i32 -> vector<8x256xf32>
    %c15_i32_15 = arith.constant 15 : i32
    %88 = vector.broadcast %c15_i32_15 : i32 to vector<1x256xi32>
    %89 = arith.cmpi slt, %2, %88 : vector<1x256xi32>
    %90 = arith.maximumf %0, %87 : vector<8x256xf32>
    %91 = vector.shape_cast %89 : vector<1x256xi1> to vector<1x256xi1>
    %92 = vector.broadcast %91 : vector<1x256xi1> to vector<8x256xi1>
    %93 = arith.select %92, %90, %0 : vector<8x256xi1>, vector<8x256xf32>
    %c254_i32 = arith.constant 254 : i32
    %94 = tpu.dynamic_rotate %93 by %c254_i32 dim 1 : vector<8x256xf32>, i32 -> vector<8x256xf32>
    %c14_i32_16 = arith.constant 14 : i32
    %95 = vector.broadcast %c14_i32_16 : i32 to vector<1x256xi32>
    %96 = arith.cmpi slt, %2, %95 : vector<1x256xi32>
    %97 = arith.maximumf %93, %94 : vector<8x256xf32>
    %98 = vector.shape_cast %96 : vector<1x256xi1> to vector<1x256xi1>
    %99 = vector.broadcast %98 : vector<1x256xi1> to vector<8x256xi1>
    %100 = arith.select %99, %97, %93 : vector<8x256xi1>, vector<8x256xf32>
    %c252_i32 = arith.constant 252 : i32
    %101 = tpu.dynamic_rotate %100 by %c252_i32 dim 1 : vector<8x256xf32>, i32 -> vector<8x256xf32>
    %c12_i32_17 = arith.constant 12 : i32
    %102 = vector.broadcast %c12_i32_17 : i32 to vector<1x256xi32>
    %103 = arith.cmpi slt, %2, %102 : vector<1x256xi32>
    %104 = arith.maximumf %100, %101 : vector<8x256xf32>
    %105 = vector.shape_cast %103 : vector<1x256xi1> to vector<1x256xi1>
    %106 = vector.broadcast %105 : vector<1x256xi1> to vector<8x256xi1>
    %107 = arith.select %106, %104, %100 : vector<8x256xi1>, vector<8x256xf32>
    %c248_i32 = arith.constant 248 : i32
    %108 = tpu.dynamic_rotate %107 by %c248_i32 dim 1 : vector<8x256xf32>, i32 -> vector<8x256xf32>
    %c8_i32_18 = arith.constant 8 : i32
    %109 = vector.broadcast %c8_i32_18 : i32 to vector<1x256xi32>
    %110 = arith.cmpi slt, %2, %109 : vector<1x256xi32>
    %111 = arith.maximumf %107, %108 : vector<8x256xf32>
    %112 = vector.shape_cast %110 : vector<1x256xi1> to vector<1x256xi1>
    %113 = vector.broadcast %112 : vector<1x256xi1> to vector<8x256xi1>
    %114 = arith.select %113, %111, %107 : vector<8x256xi1>, vector<8x256xf32>
    %115 = tpu.concatenate %0, %30, %58, %86, %114 in 0 : vector<8x256xf32>, vector<8x256xf32>, vector<8x256xf32>, vector<8x256xf32>, vector<8x256xf32> -> vector<40x256xf32>
    %c0_19 = arith.constant 0 : index
    %c0_20 = arith.constant 0 : index
    %116 = vector.load %arg2[%c0_19, %c0_20] : memref<8x40xf32, #tpu.memory_space<vmem>>, vector<8x40xf32>
    %cst = arith.constant dense<0.000000e+00> : vector<8x256xf32>
    %117 = tpu.matmul %116, %115, %cst {dimension_numbers = #tpu.dot_dimension_numbers<[1], [0], [0], [1], [0, 0, 1, 1], [], []>} : vector<8x40xf32>, vector<40x256xf32>, vector<8x256xf32> -> vector<8x256xf32>
    %c0_21 = arith.constant 0 : index
    %c0_22 = arith.constant 0 : index
    %118 = vector.load %arg3[%c0_21, %c0_22] : memref<8x1xf32, #tpu.memory_space<vmem>>, vector<8x1xf32>
    %119 = vector.broadcast %118 : vector<8x1xf32> to vector<8x256xf32>
    %120 = arith.addf %117, %119 : vector<8x256xf32>
    %c0_23 = arith.constant 0 : index
    %c0_24 = arith.constant 0 : index
    %121 = vector.load %arg6[%c0_23, %c0_24] : memref<8x256xf32, #tpu.memory_space<vmem>>, vector<8x256xf32>
    tpu.vector_store %arg6[%c0_23, %c0_24], %120 {strides = array<i32>} : memref<8x256xf32, #tpu.memory_space<vmem>>, vector<8x256xf32>,
    return
  }
  func.func @transform_0(%arg0: i32) -> (i32, i32) {
    %c0_i32 = arith.constant 0 : i32
    %c0_i32_0 = arith.constant 0 : i32
    return %arg0, %c0_i32 : i32, i32
  }
  func.func @transform_1(%arg0: i32) -> (i32, i32) {
    %c0_i32 = arith.constant 0 : i32
    %c0_i32_0 = arith.constant 0 : i32
    %c0_i32_1 = arith.constant 0 : i32
    return %c0_i32, %c0_i32_0 : i32, i32
  }
  func.func @transform_2(%arg0: i32) -> (i32, i32) {
    %c0_i32 = arith.constant 0 : i32
    %c0_i32_0 = arith.constant 0 : i32
    %c0_i32_1 = arith.constant 0 : i32
    return %c0_i32, %c0_i32_0 : i32, i32
  }
  func.func @transform_3(%arg0: i32) -> (i32, i32) {
    %c0_i32 = arith.constant 0 : i32
    %c0_i32_0 = arith.constant 0 : i32
    %c0_i32_1 = arith.constant 0 : i32
    return %c0_i32, %c0_i32_0 : i32, i32
  }
  func.func @transform_4(%arg0: i32) -> (i32, i32) {
    %c0_i32 = arith.constant 0 : i32
    %c0_i32_0 = arith.constant 0 : i32
    %c0_i32_1 = arith.constant 0 : i32
    return %c0_i32, %c0_i32_0 : i32, i32
  }
  func.func @transform_5(%arg0: i32) -> (i32, i32) {
    %c0_i32 = arith.constant 0 : i32
    %c0_i32_0 = arith.constant 0 : i32
    return %arg0, %c0_i32 : i32, i32
  }
}

</mosaic_0001>

<llo_original>
// kernel: tile.8
$region0: #{tile.8}
  #allocation0 [shape = 's32[1]{0}', space=sflag, size = 0x4, scoped, tag = 'scoped memory for tile.8']
  %s0 = inlined_call_operand.vmem [shape: f32[4], index: 0, kind: input, shape index: {}]
  %s1 = inlined_call_operand.vmem [shape: f32[2,4], index: 1, kind: output, shape index: {}]
  // Predicated region
  $region2: #{tile.8} parent=0 // pred_check
    _
  $region3: #{tile.8} parent=0 // pred_check_branch
    %3 = sbr.rel (0) target = $region5
  $region4: #{tile.8} parent=0 // pred_region
    _
  $region5: #{tile.8} parent=0 // pred_fallthru
    _
  %v4 = vld [vmem:[%s0] ss:$0 sm:$0xff]
  %5 = vst [vmem:[%s1] sm:$0x3] %v4

// kernel: tile.0
$region0: #{tile.0}
  %s0 = inlined_call_operand.vmem [shape: f32[2,4], index: 0, kind: input, shape index: {}]
  %s1 = inlined_call_operand.vmem [shape: f32[8,1], index: 1, kind: output, shape index: {}]
  $region1: #{tile.0} parent=0
    #allocation0 [shape = 'u8[4096]{0}', space=vmem, size = 0x1000, scoped, tag = 'scoped mem for input reshape']
    %s3 = ssub.s32 4, 1
    %v4 = vld [vmem:[%s0] sm:%s3]
    %5 = vst [vmem:[#allocation0] sm:%s3] %v4
    %v6 = vld [vmem:[#allocation0] sm:$0x3]
    %vm7 = vcmask 7168
    %8 = vst.msk [vmem:[%s1] ss:$4 sm:$0x3] %vm7, %v6
    %v9 = vld [vmem:[#allocation0] sm:$0x3]
    %10 = vrot.lane.b32.xlu0 %v9, 127
    %v11 = vpop.permute.xlu0 %10
    %vm12 = vcmask 7168
    %s13 = scalar_lea.vmem %s1, 1
    %14 = vst.msk [vmem:[%s13] ss:$4 sm:$0x3] %vm12, %v11
    %v15 = vld [vmem:[#allocation0] sm:$0x3]
    %16 = vrot.lane.b32.xlu0 %v15, 126
    %v17 = vpop.permute.xlu0 %16
    %vm18 = vcmask 7168
    %s19 = scalar_lea.vmem %s1, 2
    %20 = vst.msk [vmem:[%s19] ss:$4 sm:$0x3] %vm18, %v17
    %v21 = vld [vmem:[#allocation0] sm:$0x3]
    %22 = vrot.lane.b32.xlu0 %v21, 125
    %v23 = vpop.permute.xlu0 %22
    %vm24 = vcmask 7168
    %s25 = scalar_lea.vmem %s1, 3
    %26 = vst.msk [vmem:[%s25] ss:$4 sm:$0x3] %vm24, %v23

// kernel: boundary_aggregation.1
$region0: #{boundary_aggregation.1}
  #allocation0 [shape = 'u32[]', space=smem, size = 0x4, offset = 0x4, fixed_abs, tag = 'smem constant byte address 0x4 - core index']
  #allocation1 [shape = 'u32[72,128]{1,0:T(1,128)}', space=vmem, size = 0x9000, scoped, tag = 'internal scratch']
  %s0 = inlined_call_operand.vmem [shape: f32[8,256], index: 0, kind: input, shape index: {}]
  %s1 = inlined_call_operand.vmem [shape: f32[8,40], index: 1, kind: input, shape index: {}]
  %s2 = inlined_call_operand.vmem [shape: f32[8,1], index: 2, kind: input, shape index: {}]
  %s3 = inlined_call_operand.vmem [shape: s32[1,256], index: 3, kind: input, shape index: {}]
  %s4 = inlined_call_operand.vmem [shape: s32[1,256], index: 4, kind: input, shape index: {}]
  %s5 = inlined_call_operand.vmem [shape: f32[8,256], index: 5, kind: output, shape index: {}]
  %s6 = sld [smem:[#allocation0]]
  $region30: #{boundary_aggregation.1} parent=0
    _
  %s8 = ssub.s32 1, %s6
  %s9 = scalar_select 0, %s8, %s6
  // Predicated region
  $region2: #{boundary_aggregation.1} parent=0 // pred_check
    _
  $region3: #{boundary_aggregation.1} parent=0 // pred_check_branch
    %11 = sbr.rel (0) target = $region5
  $region4: #{boundary_aggregation.1} parent=0 // pred_region
    _
  $region5: #{boundary_aggregation.1} parent=0 // pred_fallthru
    _
  // Predicated region
  $region6: #{boundary_aggregation.1} parent=0 // pred_check
    _
  $region7: #{boundary_aggregation.1} parent=0 // pred_check_branch
    %13 = sbr.rel (0) target = $region9
  $region8: #{boundary_aggregation.1} parent=0 // pred_region
    _
  $region9: #{boundary_aggregation.1} parent=0 // pred_fallthru
    _
  // Predicated region
  $region10: #{boundary_aggregation.1} parent=0 // pred_check
    _
  $region11: #{boundary_aggregation.1} parent=0 // pred_check_branch
    %15 = sbr.rel (0) target = $region13
  $region12: #{boundary_aggregation.1} parent=0 // pred_region
    _
  $region13: #{boundary_aggregation.1} parent=0 // pred_fallthru
    _
  // Predicated region
  $region14: #{boundary_aggregation.1} parent=0 // pred_check
    _
  $region15: #{boundary_aggregation.1} parent=0 // pred_check_branch
    %17 = sbr.rel (0) target = $region17
  $region16: #{boundary_aggregation.1} parent=0 // pred_region
    _
  $region17: #{boundary_aggregation.1} parent=0 // pred_fallthru
    _
  // Predicated region
  $region18: #{boundary_aggregation.1} parent=0 // pred_check
    _
  $region19: #{boundary_aggregation.1} parent=0 // pred_check_branch
    %19 = sbr.rel (0) target = $region21
  $region20: #{boundary_aggregation.1} parent=0 // pred_region
    _
  $region21: #{boundary_aggregation.1} parent=0 // pred_fallthru
    _
  %v20 = vld [vmem:[%s0] sm:$0xff]
  %v21 = vld [vmem:[%s0 + $0x8] sm:$0xff]
  %v22 = vld [vmem:[%s3] sm:$0x3]
  %v23 = vld [vmem:[%s4] sm:$0x3]
  %24 = vrot.lane.b32.xlu0 %v20, 16
  %v25 = vpop.permute.xlu0 %24
  %26 = vrot.lane.b32.xlu0 %v21, 16
  %v27 = vpop.permute.xlu0 %26
  %v28 = vlaneseq
  %v29 = vand.u32 %v28, 127
  %vm30 = vcmp.lt.s32.totalorder %v29, 16
  %v31 = vsel %vm30, %v25, %v27
  %v32 = vsel %vm30, %v27, %v25
  %vm33 = vcmp.ge.s32.totalorder %v22, 1
  %v34 = vmax.f32 %v20, %v32
  %v35 = vmax.f32 %v21, %v31
  %v36 = vsel %vm33, 1, 0
  %v37 = vperm.slane %v36, 0
  %v38 = vperm.slane %v36, 1
  %vm39 = vcmp.eq.s32.totalorder %v37, 1
  %vm40 = vcmp.eq.s32.totalorder %v38, 1
  %v41 = vsel %vm39, %v34, %v20
  %v42 = vsel %vm40, %v35, %v21
  %43 = vrot.lane.b32.xlu0 %v41, 32
  %v44 = vpop.permute.xlu0 %43
  %45 = vrot.lane.b32.xlu0 %v42, 32
  %v46 = vpop.permute.xlu0 %45
  %vm47 = vcmp.lt.s32.totalorder %v29, 32
  %v48 = vsel %vm47, %v44, %v46
  %v49 = vsel %vm47, %v46, %v44
  %vm50 = vcmp.ge.s32.totalorder %v22, 2
  %v51 = vmax.f32 %v41, %v49
  %v52 = vmax.f32 %v42, %v48
  %v53 = vsel %vm50, 1, 0
  %v54 = vperm.slane %v53, 0
  %v55 = vperm.slane %v53, 1
  %vm56 = vcmp.eq.s32.totalorder %v54, 1
  %vm57 = vcmp.eq.s32.totalorder %v55, 1
  %v58 = vsel %vm56, %v51, %v41
  %v59 = vsel %vm57, %v52, %v42
  %60 = vrot.lane.b32.xlu0 %v58, 64
  %v61 = vpop.permute.xlu0 %60
  %62 = vrot.lane.b32.xlu0 %v59, 64
  %v63 = vpop.permute.xlu0 %62
  %vm64 = vcmp.lt.s32.totalorder %v29, 64
  %v65 = vsel %vm64, %v61, %v63
  %v66 = vsel %vm64, %v63, %v61
  %vm67 = vcmp.ge.s32.totalorder %v22, 4
  %v68 = vmax.f32 %v58, %v66
  %v69 = vmax.f32 %v59, %v65
  %v70 = vsel %vm67, 1, 0
  %v71 = vperm.slane %v70, 0
  %v72 = vperm.slane %v70, 1
  %vm73 = vcmp.eq.s32.totalorder %v71, 1
  %vm74 = vcmp.eq.s32.totalorder %v72, 1
  %v75 = vsel %vm73, %v68, %v58
  %v76 = vsel %vm74, %v69, %v59
  %vm77 = vcmp.ge.s32.totalorder %v22, 8
  %v78 = vmax.f32 %v75, %v76
  %v79 = vsel %vm77, 1, 0
  %v80 = vperm.slane %v79, 0
  %v81 = vperm.slane %v79, 1
  %vm82 = vcmp.eq.s32.totalorder %v80, 1
  %vm83 = vcmp.eq.s32.totalorder %v81, 1
  %v84 = vsel %vm82, %v78, %v75
  %v85 = vsel %vm83, %v78, %v76
  %86 = vrot.lane.b32.xlu0 %v20, 112
  %v87 = vpop.permute.xlu0 %86
  %88 = vrot.lane.b32.xlu0 %v21, 112
  %v89 = vpop.permute.xlu0 %88
  %vm90 = vcmp.lt.s32.totalorder %v29, 112
  %v91 = vsel %vm90, %v87, %v89
  %v92 = vsel %vm90, %v89, %v87
  %vm93 = vcmp.lt.s32.totalorder %v22, 15
  %v94 = vmax.f32 %v20, %v91
  %v95 = vmax.f32 %v21, %v92
  %v96 = vsel %vm93, 1, 0
  %v97 = vperm.slane %v96, 0
  %v98 = vperm.slane %v96, 1
  %vm99 = vcmp.eq.s32.totalorder %v97, 1
  %vm100 = vcmp.eq.s32.totalorder %v98, 1
  %v101 = vsel %vm99, %v94, %v20
  %v102 = vsel %vm100, %v95, %v21
  %103 = vrot.lane.b32.xlu0 %v101, 96
  %v104 = vpop.permute.xlu0 %103
  %105 = vrot.lane.b32.xlu0 %v102, 96
  %v106 = vpop.permute.xlu0 %105
  %vm107 = vcmp.lt.s32.totalorder %v29, 96
  %v108 = vsel %vm107, %v104, %v106
  %v109 = vsel %vm107, %v106, %v104
  %vm110 = vcmp.lt.s32.totalorder %v22, 14
  %v111 = vmax.f32 %v101, %v108
  %v112 = vmax.f32 %v102, %v109
  %v113 = vsel %vm110, 1, 0
  %v114 = vperm.slane %v113, 0
  %v115 = vperm.slane %v113, 1
  %vm116 = vcmp.eq.s32.totalorder %v114, 1
  %vm117 = vcmp.eq.s32.totalorder %v115, 1
  %v118 = vsel %vm116, %v111, %v101
  %v119 = vsel %vm117, %v112, %v102
  %120 = vrot.lane.b32.xlu0 %v118, 64
  %v121 = vpop.permute.xlu0 %120
  %122 = vrot.lane.b32.xlu0 %v119, 64
  %v123 = vpop.permute.xlu0 %122
  %v124 = vsel %vm64, %v121, %v123
  %v125 = vsel %vm64, %v123, %v121
  %vm126 = vcmp.lt.s32.totalorder %v22, 12
  %v127 = vmax.f32 %v118, %v124
  %v128 = vmax.f32 %v119, %v125
  %v129 = vsel %vm126, 1, 0
  %v130 = vperm.slane %v129, 0
  %v131 = vperm.slane %v129, 1
  %vm132 = vcmp.eq.s32.totalorder %v130, 1
  %vm133 = vcmp.eq.s32.totalorder %v131, 1
  %v134 = vsel %vm132, %v127, %v118
  %v135 = vsel %vm133, %v128, %v119
  %vm136 = vcmp.lt.s32.totalorder %v22, 8
  %v137 = vmax.f32 %v134, %v135
  %v138 = vsel %vm136, 1, 0
  %v139 = vperm.slane %v138, 0
  %v140 = vperm.slane %v138, 1
  %vm141 = vcmp.eq.s32.totalorder %v139, 1
  %vm142 = vcmp.eq.s32.totalorder %v140, 1
  %v143 = vsel %vm141, %v137, %v134
  %v144 = vsel %vm142, %v137, %v135
  %145 = vrot.lane.b32.xlu0 %v20, 1
  %v146 = vpop.permute.xlu0 %145
  %147 = vrot.lane.b32.xlu0 %v21, 1
  %v148 = vpop.permute.xlu0 %147
  %vm149 = vcmp.lt.s32.totalorder %v29, 1
  %v150 = vsel %vm149, %v146, %v148
  %v151 = vsel %vm149, %v148, %v146
  %vm152 = vcmp.ge.s32.totalorder %v23, 1
  %v153 = vmax.f32 %v20, %v151
  %v154 = vmax.f32 %v21, %v150
  %v155 = vsel %vm152, 1, 0
  %v156 = vperm.slane %v155, 0
  %v157 = vperm.slane %v155, 1
  %vm158 = vcmp.eq.s32.totalorder %v156, 1
  %vm159 = vcmp.eq.s32.totalorder %v157, 1
  %v160 = vsel %vm158, %v153, %v20
  %v161 = vsel %vm159, %v154, %v21
  %162 = vrot.lane.b32.xlu0 %v160, 2
  %v163 = vpop.permute.xlu0 %162
  %164 = vrot.lane.b32.xlu0 %v161, 2
  %v165 = vpop.permute.xlu0 %164
  %vm166 = vcmp.lt.s32.totalorder %v29, 2
  %v167 = vsel %vm166, %v163, %v165
  %v168 = vsel %vm166, %v165, %v163
  %vm169 = vcmp.ge.s32.totalorder %v23, 2
  %v170 = vmax.f32 %v160, %v168
  %v171 = vmax.f32 %v161, %v167
  %v172 = vsel %vm169, 1, 0
  %v173 = vperm.slane %v172, 0
  %v174 = vperm.slane %v172, 1
  %vm175 = vcmp.eq.s32.totalorder %v173, 1
  %vm176 = vcmp.eq.s32.totalorder %v174, 1
  %v177 = vsel %vm175, %v170, %v160
  %v178 = vsel %vm176, %v171, %v161
  %179 = vrot.lane.b32.xlu0 %v177, 4
  %v180 = vpop.permute.xlu0 %179
  %181 = vrot.lane.b32.xlu0 %v178, 4
  %v182 = vpop.permute.xlu0 %181
  %vm183 = vcmp.lt.s32.totalorder %v29, 4
  %v184 = vsel %vm183, %v180, %v182
  %v185 = vsel %vm183, %v182, %v180
  %vm186 = vcmp.ge.s32.totalorder %v23, 4
  %v187 = vmax.f32 %v177, %v185
  %v188 = vmax.f32 %v178, %v184
  %v189 = vsel %vm186, 1, 0
  %v190 = vperm.slane %v189, 0
  %v191 = vperm.slane %v189, 1
  %vm192 = vcmp.eq.s32.totalorder %v190, 1
  %vm193 = vcmp.eq.s32.totalorder %v191, 1
  %v194 = vsel %vm192, %v187, %v177
  %v195 = vsel %vm193, %v188, %v178
  %196 = vrot.lane.b32.xlu0 %v194, 8
  %v197 = vpop.permute.xlu0 %196
  %198 = vrot.lane.b32.xlu0 %v195, 8
  %v199 = vpop.permute.xlu0 %198
  %vm200 = vcmp.lt.s32.totalorder %v29, 8
  %v201 = vsel %vm200, %v197, %v199
  %v202 = vsel %vm200, %v199, %v197
  %vm203 = vcmp.ge.s32.totalorder %v23, 8
  %v204 = vmax.f32 %v194, %v202
  %v205 = vmax.f32 %v195, %v201
  %v206 = vsel %vm203, 1, 0
  %v207 = vperm.slane %v206, 0
  %v208 = vperm.slane %v206, 1
  %vm209 = vcmp.eq.s32.totalorder %v207, 1
  %vm210 = vcmp.eq.s32.totalorder %v208, 1
  %v211 = vsel %vm209, %v204, %v194
  %v212 = vsel %vm210, %v205, %v195
  %213 = vrot.lane.b32.xlu0 %v20, 127
  %v214 = vpop.permute.xlu0 %213
  %215 = vrot.lane.b32.xlu0 %v21, 127
  %v216 = vpop.permute.xlu0 %215
  %vm217 = vcmp.lt.s32.totalorder %v29, 127
  %v218 = vsel %vm217, %v214, %v216
  %v219 = vsel %vm217, %v216, %v214
  %vm220 = vcmp.lt.s32.totalorder %v23, 15
  %v221 = vmax.f32 %v20, %v218
  %v222 = vmax.f32 %v21, %v219
  %v223 = vsel %vm220, 1, 0
  %v224 = vperm.slane %v223, 0
  %v225 = vperm.slane %v223, 1
  %vm226 = vcmp.eq.s32.totalorder %v224, 1
  %vm227 = vcmp.eq.s32.totalorder %v225, 1
  %v228 = vsel %vm226, %v221, %v20
  %v229 = vsel %vm227, %v222, %v21
  %230 = vrot.lane.b32.xlu0 %v228, 126
  %v231 = vpop.permute.xlu0 %230
  %232 = vrot.lane.b32.xlu0 %v229, 126
  %v233 = vpop.permute.xlu0 %232
  %vm234 = vcmp.lt.s32.totalorder %v29, 126
  %v235 = vsel %vm234, %v231, %v233
  %v236 = vsel %vm234, %v233, %v231
  %vm237 = vcmp.lt.s32.totalorder %v23, 14
  %v238 = vmax.f32 %v228, %v235
  %v239 = vmax.f32 %v229, %v236
  %v240 = vsel %vm237, 1, 0
  %v241 = vperm.slane %v240, 0
  %v242 = vperm.slane %v240, 1
  %vm243 = vcmp.eq.s32.totalorder %v241, 1
  %vm244 = vcmp.eq.s32.totalorder %v242, 1
  %v245 = vsel %vm243, %v238, %v228
  %v246 = vsel %vm244, %v239, %v229
  %247 = vrot.lane.b32.xlu0 %v245, 124
  %v248 = vpop.permute.xlu0 %247
  %249 = vrot.lane.b32.xlu0 %v246, 124
  %v250 = vpop.permute.xlu0 %249
  %vm251 = vcmp.lt.s32.totalorder %v29, 124
  %v252 = vsel %vm251, %v248, %v250
  %v253 = vsel %vm251, %v250, %v248
  %vm254 = vcmp.lt.s32.totalorder %v23, 12
  %v255 = vmax.f32 %v245, %v252
  %v256 = vmax.f32 %v246, %v253
  %v257 = vsel %vm254, 1, 0
  %v258 = vperm.slane %v257, 0
  %v259 = vperm.slane %v257, 1
  %vm260 = vcmp.eq.s32.totalorder %v258, 1
  %vm261 = vcmp.eq.s32.totalorder %v259, 1
  %v262 = vsel %vm260, %v255, %v245
  %v263 = vsel %vm261, %v256, %v246
  %264 = vrot.lane.b32.xlu0 %v262, 120
  %v265 = vpop.permute.xlu0 %264
  %266 = vrot.lane.b32.xlu0 %v263, 120
  %v267 = vpop.permute.xlu0 %266
  %vm268 = vcmp.lt.s32.totalorder %v29, 120
  %v269 = vsel %vm268, %v265, %v267
  %v270 = vsel %vm268, %v267, %v265
  %vm271 = vcmp.lt.s32.totalorder %v23, 8
  %v272 = vmax.f32 %v262, %v269
  %v273 = vmax.f32 %v263, %v270
  %v274 = vsel %vm271, 1, 0
  %v275 = vperm.slane %v274, 0
  %v276 = vperm.slane %v274, 1
  %vm277 = vcmp.eq.s32.totalorder %v275, 1
  %vm278 = vcmp.eq.s32.totalorder %v276, 1
  %v279 = vsel %vm277, %v272, %v262
  %v280 = vsel %vm278, %v273, %v263
  %v281 = vld [vmem:[%s1] sm:$0xff]
  %v282 = vld [vmem:[%s2] sm:$0xff]
  %284 = vset.pattern.permute.xlu0 0
  %285 = vperm.xlu0 %284, %v282
  %v286 = vpop.permute.xlu0 %285
  %vm288 = vcmask 326656
  %v290 = vsel %vm288, %v281, 0
  %292 = vmatpush.msra.mxu0 0.0
  %293 = vmatpush.msra.mxu0 0.0
  %294 = vmatpush.msra.mxu0 0.0
  %295 = vmatpush.msra.mxu0 0.0
  %296 = vmatpush.msra.mxu0 0.0
  %297 = vmatpush.msra.mxu0 0.0
  %298 = vmatpush.msra.mxu0 0.0
  %299 = vmatpush.msra.mxu0 0.0
  %300 = vmatpush.msra.mxu0 0.0
  %301 = vmatpush.msra.mxu0 0.0
  %302 = vmatpush.msra.mxu0 0.0
  %303 = vmatpush.msra.mxu0 %v279
  %304 = vmatpush.msra.mxu0 %v211
  %305 = vmatpush.msra.mxu0 %v143
  %306 = vmatpush.msra.mxu0 %v84
  %307 = vmatpush.msra.mxu0 %v20
  %308 = vmatmul.f32.gmra.mxu0 %v290
  %v309 = vpop.f32.mrf.mxu0
  %v310 = vadd.f32 %v286, %v309
  %311 = vdwg.mxu0
  %312 = vmatpush.msra.mxu0 0.0
  %313 = vmatpush.msra.mxu0 0.0
  %314 = vmatpush.msra.mxu0 0.0
  %315 = vmatpush.msra.mxu0 0.0
  %316 = vmatpush.msra.mxu0 0.0
  %317 = vmatpush.msra.mxu0 0.0
  %318 = vmatpush.msra.mxu0 0.0
  %319 = vmatpush.msra.mxu0 0.0
  %320 = vmatpush.msra.mxu0 0.0
  %321 = vmatpush.msra.mxu0 0.0
  %322 = vmatpush.msra.mxu0 0.0
  %323 = vmatpush.msra.mxu0 %v280
  %324 = vmatpush.msra.mxu0 %v212
  %325 = vmatpush.msra.mxu0 %v144
  %326 = vmatpush.msra.mxu0 %v85
  %327 = vmatpush.msra.mxu0 %v21
  %328 = vmatmul.f32.gmra.mxu0 %v290
  %v329 = vpop.f32.mrf.mxu0
  %v330 = vadd.f32 %v286, %v329
  %331 = vdwg.mxu0
  %332 = vst [vmem:[%s5] sm:$0xff] %v310
  %333 = vst [vmem:[%s5 + $0x8] sm:$0xff] %v330
  // Predicated region
  $region22: #{boundary_aggregation.1} parent=0 // pred_check
    _
  $region23: #{boundary_aggregation.1} parent=0 // pred_check_branch
    %335 = sbr.rel (0) target = $region25
  $region24: #{boundary_aggregation.1} parent=0 // pred_region
    _
  $region25: #{boundary_aggregation.1} parent=0 // pred_fallthru
    _
  // Predicated region
  $region26: #{boundary_aggregation.1} parent=0 // pred_check
    _
  $region27: #{boundary_aggregation.1} parent=0 // pred_check_branch
    %337 = sbr.rel (0) target = $region29
  $region28: #{boundary_aggregation.1} parent=0 // pred_region
    _
  $region29: #{boundary_aggregation.1} parent=0 // pred_fallthru
    _

</llo_original>
